<compile_context>
chip_gen: v7x
topology: tpu7x:2x2x1
jax: 0.10.0
libtpu: 0.0.40
codegen_flags: <defaults>
</compile_context>

<pallas_src>
import jax
import jax.numpy as jnp
from jax.experimental import pallas as pl
from jax.experimental.pallas import tpu as pltpu

_LANES = 128
_MAX_TILE_ROWS = 1024  # (1024, 128) f32 tile = 512 KiB per input buffer


def _xtanh_kernel(y_ref, yp_ref, out_ref, acc_ref):
    """Per-core partial sum of e*tanh(e) over its slice of tiles."""
    i = pl.program_id(1)  # inner ("arbitrary") reduction axis

    @pl.when(i == 0)
    def _():
        acc_ref[...] = jnp.zeros_like(acc_ref)

    e = y_ref[...].astype(jnp.float32) - yp_ref[...].astype(jnp.float32)
    # Elementwise accumulation stays on the VPU; free slack under the DMA loop.
    acc_ref[...] += e * jnp.tanh(e)

    @pl.when(i == pl.num_programs(1) - 1)
    def _():
        # One cross-lane/sublane reduction per core, at the very end.
        out_ref[0, 0] = jnp.sum(acc_ref[...])


def xtanh_loss(y_t, y_prime_t):
    assert y_t.shape == y_prime_t.shape
    n = y_t.size
    flat_y = jnp.ravel(y_t)        # contiguous reshape: no HBM copy
    flat_yp = jnp.ravel(y_prime_t)

    tile_elems = _MAX_TILE_ROWS * _LANES

    if n >= 2 * tile_elems:
        # Large path: two core-slices of equal tile count (v7x megacore split).
        num_cores = 2
        tile_rows = _MAX_TILE_ROWS
        tiles_per_core = n // (num_cores * tile_elems)
    else:
        # Small path: one full-array block on one core (block == full dims).
        num_cores = 1
        tiles_per_core = 1
        tile_rows = n // _LANES  # may be 0 for n < 128

    n_kernel = num_cores * tiles_per_core * tile_rows * _LANES

    # Tail not covered by full tiles: < 2 tiles (< 1 MiB f32) -> plain jnp.
    if n_kernel < n:
        e_tail = (flat_y[n_kernel:].astype(jnp.float32)
                  - flat_yp[n_kernel:].astype(jnp.float32))
        tail_sum = jnp.sum(e_tail * jnp.tanh(e_tail))
    else:
        tail_sum = jnp.float32(0.0)

    if n_kernel == 0:
        # Input smaller than one lane row; nothing for the kernel to do.
        return tail_sum / jnp.float32(n)

    rows = n_kernel // _LANES
    y2d = flat_y[:n_kernel].reshape(rows, _LANES)
    yp2d = flat_yp[:n_kernel].reshape(rows, _LANES)

    in_spec = pl.BlockSpec(
        (tile_rows, _LANES),
        lambda c, i: (c * tiles_per_core + i, 0),
    )

    partial = pl.pallas_call(
        _xtanh_kernel,
        out_shape=jax.ShapeDtypeStruct((num_cores, 1), jnp.float32),
        grid_spec=pltpu.PrefetchScalarGridSpec(
            num_scalar_prefetch=0,
            grid=(num_cores, tiles_per_core),
            in_specs=[in_spec, in_spec],
            out_specs=pl.BlockSpec(
                (1, 1), lambda c, i: (c, 0), memory_space=pltpu.SMEM
            ),
            scratch_shapes=[pltpu.VMEM((tile_rows, _LANES), jnp.float32)],
        ),
        compiler_params=pltpu.CompilerParams(
            dimension_semantics=("parallel", "arbitrary"),
        ),
    )(y2d, yp2d)

    return (jnp.sum(partial) + tail_sum) / jnp.float32(n)


def xtanh_loss_ref(y_t, y_prime_t):
    e = y_t.astype(jnp.float32) - y_prime_t.astype(jnp.float32)
    return jnp.mean(e * jnp.tanh(e))


if __name__ == "__main__":
    key = jax.random.PRNGKey(0)
    k1, k2 = jax.random.split(key)
    shape = (2, 4, 16, 16)  # NCHW-like example inputs
    y_t = jax.random.normal(k1, shape, dtype=jnp.float32)
    y_prime_t = jax.random.normal(k2, shape, dtype=jnp.float32)

    loss = jax.block_until_ready(xtanh_loss(y_t, y_prime_t))
    ref = jax.block_until_ready(xtanh_loss_ref(y_t, y_prime_t))

    assert jnp.allclose(loss, ref, rtol=1e-5, atol=1e-6), (loss, ref)
    print("KERNEL_OK")
</pallas_src>

<mosaic_0001>
module attributes {stable_mosaic.version = 11 : i64} {
  func.func @_xtanh_kernel(%arg0: i32, %arg1: i32, %arg2: memref<16x128xf32, #tpu.memory_space<vmem>>, %arg3: memref<16x128xf32, #tpu.memory_space<vmem>>, %arg4: memref<1x1xf32, #tpu.memory_space<smem>>, %arg5: memref<16x128xf32, #tpu.memory_space<vmem>>) attributes {dimension_semantics = [#tpu.dimension_semantics<parallel>, #tpu.dimension_semantics<arbitrary>], iteration_bounds = array<i64: 1, 1>, scalar_prefetch = 0 : i64, scratch_operands = 1 : i64, tpu.core_type = #tpu.core_type<tc>, window_params = [{transform_indices = @transform_0, window_bounds = array<i64: 16, 128>}, {transform_indices = @transform_1, window_bounds = array<i64: 16, 128>}, {transform_indices = @transform_2, window_bounds = array<i64: 1, 1>}]} {
    %c0_i32 = arith.constant 0 : i32
    %0 = arith.cmpi eq, %arg1, %c0_i32 : i32
    %1 = arith.extui %0 : i1 to i32
    %c0_i32_0 = arith.constant 0 : i32
    %2 = arith.cmpi ne, %1, %c0_i32_0 : i32
    scf.if %2 {
      %cst = arith.constant 0.000000e+00 : f32
      %14 = vector.broadcast %cst : f32 to vector<16x128xf32>
      %c0_10 = arith.constant 0 : index
      %c0_11 = arith.constant 0 : index
      %15 = vector.load %arg5[%c0_10, %c0_11] : memref<16x128xf32, #tpu.memory_space<vmem>>, vector<16x128xf32>
      tpu.vector_store %arg5[%c0_10, %c0_11], %14 {strides = array<i32>} : memref<16x128xf32, #tpu.memory_space<vmem>>, vector<16x128xf32>,
    } else {
    }
    %c0 = arith.constant 0 : index
    %c0_1 = arith.constant 0 : index
    %3 = vector.load %arg2[%c0, %c0_1] : memref<16x128xf32, #tpu.memory_space<vmem>>, vector<16x128xf32>
    %c0_2 = arith.constant 0 : index
    %c0_3 = arith.constant 0 : index
    %4 = vector.load %arg3[%c0_2, %c0_3] : memref<16x128xf32, #tpu.memory_space<vmem>>, vector<16x128xf32>
    %5 = arith.subf %3, %4 : vector<16x128xf32>
    %c0_4 = arith.constant 0 : index
    %c0_5 = arith.constant 0 : index
    %6 = vector.load %arg5[%c0_4, %c0_5] : memref<16x128xf32, #tpu.memory_space<vmem>>, vector<16x128xf32>
    %7 = math.tanh %5 : vector<16x128xf32>
    %8 = arith.mulf %5, %7 : vector<16x128xf32>
    %9 = arith.addf %6, %8 : vector<16x128xf32>
    %c0_6 = arith.constant 0 : index
    %c0_7 = arith.constant 0 : index
    %10 = vector.load %arg5[%c0_6, %c0_7] : memref<16x128xf32, #tpu.memory_space<vmem>>, vector<16x128xf32>
    tpu.vector_store %arg5[%c0_6, %c0_7], %9 {strides = array<i32>} : memref<16x128xf32, #tpu.memory_space<vmem>>, vector<16x128xf32>,
    %c0_i32_8 = arith.constant 0 : i32
    %11 = arith.cmpi eq, %arg1, %c0_i32_8 : i32
    %12 = arith.extui %11 : i1 to i32
    %c0_i32_9 = arith.constant 0 : i32
    %13 = arith.cmpi ne, %12, %c0_i32_9 : i32
    scf.if %13 {
      %c0_10 = arith.constant 0 : index
      %c0_11 = arith.constant 0 : index
      %14 = vector.load %arg5[%c0_10, %c0_11] : memref<16x128xf32, #tpu.memory_space<vmem>>, vector<16x128xf32>
      %15 = vector.shape_cast %14 : vector<16x128xf32> to vector<1x16x128xf32>
      %cst = arith.constant dense<0.000000e+00> : vector<1xf32>
      %16 = vector.multi_reduction <add>, %15, %cst [1, 2] : vector<1x16x128xf32> to vector<1xf32>
      %17 = vector.shape_cast %16 : vector<1xf32> to vector<1x1x1xf32>
      %18 = vector.extract %17[0, 0, 0] : f32 from vector<1x1x1xf32>
      %c0_12 = arith.constant 0 : index
      %c0_13 = arith.constant 0 : index
      %19 = memref.load %arg4[%c0_12, %c0_13] : memref<1x1xf32, #tpu.memory_space<smem>>
      memref.store %18, %arg4[%c0_12, %c0_13] : memref<1x1xf32, #tpu.memory_space<smem>>
    } else {
    }
    return
  }
  func.func @transform_0(%arg0: i32, %arg1: i32) -> (i32, i32) {
    %c1_i32 = arith.constant 1 : i32
    %0 = arith.muli %arg0, %c1_i32 : i32
    %1 = arith.addi %0, %arg1 : i32
    %c0_i32 = arith.constant 0 : i32
    %c0_i32_0 = arith.constant 0 : i32
    return %1, %c0_i32 : i32, i32
  }
  func.func @transform_1(%arg0: i32, %arg1: i32) -> (i32, i32) {
    %c1_i32 = arith.constant 1 : i32
    %0 = arith.muli %arg0, %c1_i32 : i32
    %1 = arith.addi %0, %arg1 : i32
    %c0_i32 = arith.constant 0 : i32
    %c0_i32_0 = arith.constant 0 : i32
    return %1, %c0_i32 : i32, i32
  }
  func.func @transform_2(%arg0: i32, %arg1: i32) -> (i32, i32) {
    %c0_i32 = arith.constant 0 : i32
    %c0_i32_0 = arith.constant 0 : i32
    return %arg0, %c0_i32 : i32, i32
  }
}

</mosaic_0001>

<llo_original>
// kernel: tpu_custom_call.1
$region0: #{tpu_custom_call.1}
  #allocation0 [shape = 'u32[]', space=smem, size = 0x4, offset = 0x4, fixed_abs, tag = 'smem constant byte address 0x4 - core index']
  #allocation1 [shape = 'u32[144,128]{1,0:T(1,128)}', space=vmem, size = 0x12000, scoped, tag = 'internal scratch']
  #allocation2 [shape = 'f32[16,128]{1,0:T(8,128)}', space=vmem, size = 0x2000, scoped, tag = 'scratch operand']
  %s0 = inlined_call_operand.hbm [shape: f32[16,128], index: 0, kind: input, shape index: {}]
  %s1 = inlined_call_operand.hbm [shape: f32[16,128], index: 1, kind: input, shape index: {}]
  %s2 = inlined_call_operand.hbm [shape: f32[1,1], index: 2, kind: output, shape index: {}]
  %s3 = sld [smem:[#allocation0]]
  $region34: #{tpu_custom_call.1} parent=0
    _
  %s5 = ssub.s32 1, %s3
  %s6 = scalar_select 0, %s5, %s3
  $region1: #{tpu_custom_call.1} parent=0
    #allocation3 [shape = 'u8[8192]{0}', space=vmem, size = 0x2000, scoped, tag = 'input window, operand 0, single buffered']
    #allocation4 [shape = 's32[1]{0}', space=sflag, size = 0x4, scoped, tag = 'scoped memory for tpu_custom_call.1']
    #allocation5 [shape = 's32[1]{0}', space=sflag, size = 0x4, scoped, tag = 'scoped memory for tpu_custom_call.1']
    #allocation6 [shape = 'u8[8192]{0}', space=vmem, size = 0x2000, scoped, tag = 'input window, operand 1, single buffered']
    #allocation7 [shape = 's32[1]{0}', space=sflag, size = 0x4, scoped, tag = 'scoped memory for tpu_custom_call.1']
    #allocation8 [shape = 'u8[512]{0}', space=smem, size = 0x200, scoped, tag = 'output window, operand 0, single buffered']
    %7 = vsyncpa [#allocation4], 0
    %8 = vsyncpa [#allocation7], 0
    %9 = vsyncpa [#allocation5], 0
    // Predicated region
    $region2: #{tpu_custom_call.1} parent=1 // pred_check
      _
    $region3: #{tpu_custom_call.1} parent=1 // pred_check_branch
      %11 = sbr.rel (0) target = $region5
    $region4: #{tpu_custom_call.1} parent=1 // pred_region
      %s12 = sadd.s32 0, 0
      %s13 = smul.u32 2, %s12
      %s15 = ssub.s32 256, 256
      %16 = vsyncadd [#allocation4], %s15
      %s17 = smul.addr %s13, 128
      %s18 = scalar_lea.hbm %s0, %s17
      %s19 = sshll.u32 [#allocation3], 4
      %s20 = int_to_ptr.vmem [resolvable:$true] %s19
      %25 = dma.hbm_to_vmem [thread:$0]  %s18, 256, %s20, [#allocation4], 128, 128, 8
    $region5: #{tpu_custom_call.1} parent=1 // pred_fallthru
      _
    // Predicated region
    $region6: #{tpu_custom_call.1} parent=1 // pred_check
      _
    $region7: #{tpu_custom_call.1} parent=1 // pred_check_branch
      %27 = sbr.rel (0) target = $region9
    $region8: #{tpu_custom_call.1} parent=1 // pred_region
      %s28 = sadd.s32 0, 0
      %s29 = smul.u32 2, %s28
      %s31 = ssub.s32 256, 256
      %32 = vsyncadd [#allocation7], %s31
      %s33 = smul.addr %s29, 128
      %s34 = scalar_lea.hbm %s1, %s33
      %s35 = sshll.u32 [#allocation6], 4
      %s36 = int_to_ptr.vmem [resolvable:$true] %s35
      %41 = dma.hbm_to_vmem [thread:$0]  %s34, 256, %s36, [#allocation7], 128, 128, 8
    $region9: #{tpu_custom_call.1} parent=1 // pred_fallthru
      _
    // Predicated region
    $region10: #{tpu_custom_call.1} parent=1 // pred_check
      _
    $region11: #{tpu_custom_call.1} parent=1 // pred_check_branch
      %43 = sbr.rel (0) target = $region13
    $region12: #{tpu_custom_call.1} parent=1 // pred_region
      %44 = dma.done [#allocation4], 256
    $region13: #{tpu_custom_call.1} parent=1 // pred_fallthru
      _
    // Predicated region
    $region14: #{tpu_custom_call.1} parent=1 // pred_check
      _
    $region15: #{tpu_custom_call.1} parent=1 // pred_check_branch
      %46 = sbr.rel (0) target = $region17
    $region16: #{tpu_custom_call.1} parent=1 // pred_region
      %47 = dma.done [#allocation7], 256
    $region17: #{tpu_custom_call.1} parent=1 // pred_fallthru
      _
    %s48 = sadd.s32 0, 0
    %s49 = smul.u32 2, %s48
    %s50 = sadd.s32 0, 0
    %s51 = smul.u32 2, %s50
    %p52 = scmp.eq.s32.totalorder 0, 0
    // Predicated region
    $region18: #{tpu_custom_call.1} parent=1 // pred_check
      %p53 = pneg %p52
    $region19: #{tpu_custom_call.1} parent=1 // pred_check_branch
      %55 = sbr.rel (%p53) target = $region21
    $region20: #{tpu_custom_call.1} parent=1 // pred_region
      %56 = vst [vmem:[#allocation2] sm:$0xff] 0.0
      %57 = vst [vmem:[#allocation2 + $0x8] sm:$0xff] 0.0
    $region21: #{tpu_custom_call.1} parent=1 // pred_fallthru
      _
    %v58 = vld [vmem:[#allocation3] sm:$0xff]
    %v59 = vld [vmem:[#allocation3 + $0x8] sm:$0xff]
    %v60 = vld [vmem:[#allocation6] sm:$0xff]
    %v61 = vld [vmem:[#allocation6 + $0x8] sm:$0xff]
    %v62 = vsub.f32 %v58, %v60
    %v63 = vsub.f32 %v59, %v61
    %v64 = vld [vmem:[#allocation2] sm:$0xff]
    %v65 = vld [vmem:[#allocation2 + $0x8] sm:$0xff]
    %v66 = vtanh.pop %v62
    %v67 = vtanh.pop %v63
    %v68 = vmul.f32 %v62, %v66
    %v69 = vmul.f32 %v63, %v67
    %v70 = vadd.f32 %v64, %v68
    %v71 = vadd.f32 %v65, %v69
    %72 = vst [vmem:[#allocation2] sm:$0xff] %v70
    %73 = vst [vmem:[#allocation2 + $0x8] sm:$0xff] %v71
    // Predicated region
    $region22: #{tpu_custom_call.1} parent=1 // pred_check
      %p74 = pneg %p52
    $region23: #{tpu_custom_call.1} parent=1 // pred_check_branch
      %76 = sbr.rel (%p74) target = $region25
    $region24: #{tpu_custom_call.1} parent=1 // pred_region
      %v77 = vld [vmem:[#allocation2] sm:$0xff]
      %v78 = vld [vmem:[#allocation2 + $0x8] sm:$0xff]
      %v79 = vadd.f32 %v77, %v78
      %80 = vadd.xlane.f32.xlu0 %v79
      %v81 = vpop.xlane.xlu0 %80
      %v82 = vrot.slane %v81, 4
      %v83 = vadd.f32 %v81, %v82
      %v84 = vrot.slane %v83, 2
      %v85 = vadd.f32 %v83, %v84
      %v86 = vrot.slane %v85, 1
      %v87 = vadd.f32 %v85, %v86
      %s88 = vtos %v87
      %s89 = scalar_lea.smem [#allocation8], 0
      %90 = sst [smem:[%s89]] %s88
    $region25: #{tpu_custom_call.1} parent=1 // pred_fallthru
      _
    // Predicated region
    $region26: #{tpu_custom_call.1} parent=1 // pred_check
      _
    $region27: #{tpu_custom_call.1} parent=1 // pred_check_branch
      %92 = sbr.rel (0) target = $region29
    $region28: #{tpu_custom_call.1} parent=1 // pred_region
      %s94 = ssub.s32 16, 16
      %95 = vsyncadd [#allocation5], %s94
      %98 = dma.smem_to_hbm [#allocation8], 16, %s2, [#allocation5]
    $region29: #{tpu_custom_call.1} parent=1 // pred_fallthru
      _
    // Predicated region
    $region30: #{tpu_custom_call.1} parent=1 // pred_check
      _
    $region31: #{tpu_custom_call.1} parent=1 // pred_check_branch
      %100 = sbr.rel (0) target = $region33
    $region32: #{tpu_custom_call.1} parent=1 // pred_region
      %101 = dma.done [#allocation5], 16
    $region33: #{tpu_custom_call.1} parent=1 // pred_fallthru
      _
    %102 = sfence
    %103 = vsyncpa [#allocation4], 1
    %104 = vsyncpa [#allocation7], 1
    %105 = vsyncpa [#allocation5], 1

</llo_original>
